<compile_context>
chip_gen: v6e
topology: v6e:2x2x1
jax: 0.10.0
libtpu: 0.0.40
codegen_flags: <defaults>
</compile_context>

<pallas_src>
import jax
import jax.numpy as jnp
from jax import lax
from jax.experimental import pallas as pl
from jax.experimental.pallas import tpu as pltpu

LANES = 128
SUBLANES = 8
NUM_SLICES = 2                      # parallel grid axis -> both v7x TensorCores
MAX_BLOCK_BYTES = 4 * 1024 * 1024   # per-input block (Pallas double-buffers it)
VMEM_LIMIT_BYTES = 48 * 1024 * 1024


def _make_dice_kernel(block_groups, last_groups, steps, gran):
    """Kernel for static (block_groups, last_groups, steps, gran)."""

    def kernel(x_ref, y_ref, o_ref):
        # x_ref / y_ref : (1, block_groups, gran, LANES) input tiles
        # o_ref         : (1, 3, gran, LANES) per-slice partials, resident
        #                 across the inner ("arbitrary") reduction axis.
        i = pl.program_id(1)

        @pl.when(i == 0)
        def _init():
            o_ref[...] = jnp.zeros_like(o_ref)

        def accumulate(ngroups):
            def body(g, carry):
                xy, xx, yy = carry
                x = x_ref[0, g].astype(jnp.float32)
                y = y_ref[0, g].astype(jnp.float32)
                return (xy + x * y, xx + x * x, yy + y * y)

            zero = jnp.zeros((gran, LANES), jnp.float32)
            xy, xx, yy = lax.fori_loop(
                0, ngroups, body, (zero, zero, zero),
                unroll=max(1, min(8, ngroups)))
            o_ref[0, 0] += xy
            o_ref[0, 1] += xx
            o_ref[0, 2] += yy

        if last_groups == block_groups:
            # Every block is full: single unmasked hot path.
            accumulate(block_groups)
        else:
            # Ragged last block of each slice: keep the hot path unmasked and
            # give the last step its own statically-shorter accumulate.
            @pl.when(i != steps - 1)
            def _full():
                accumulate(block_groups)

            @pl.when(i == steps - 1)
            def _ragged():
                accumulate(last_groups)

    return kernel


def _partial_sums(a, b):
    a32 = a.astype(jnp.float32)
    b32 = b.astype(jnp.float32)
    return jnp.dot(a32, b32), jnp.sum(a32 * a32), jnp.sum(b32 * b32)


def _combine(xy, xx, yy):
    inter = xy + jnp.float32(0.0001)
    union = xx + yy + jnp.float32(0.0001)
    return 2.0 * inter / union


def dice_coeff(inp, target):
    """Dice coefficient of two 1-D vectors (matches torch.dot semantics)."""
    assert inp.ndim == 1 and target.ndim == 1 and inp.shape == target.shape
    n = inp.shape[0]

    itemsize = jnp.dtype(inp.dtype).itemsize
    gran = max(SUBLANES, 32 // itemsize)   # sublane rows per packed tile (f32:8, bf16:16)
    group_elems = gran * LANES             # elements per (gran, 128) vreg group

    if n < group_elems:
        # Too small for even one tile; a kernel launch is not worth it here.
        return _combine(*_partial_sums(inp, target))

    num_slices = NUM_SLICES if n >= NUM_SLICES * group_elems else 1
    n_main = (n // (num_slices * group_elems)) * (num_slices * group_elems)

    x_main = inp if n_main == n else inp[:n_main]
    y_main = target if n_main == n else target[:n_main]

    groups_per_slice = (n_main // group_elems) // num_slices
    max_block_groups = max(1, MAX_BLOCK_BYTES // (group_elems * itemsize))
    block_groups = min(max_block_groups, groups_per_slice)
    steps = pl.cdiv(groups_per_slice, block_groups)
    last_groups = groups_per_slice - (steps - 1) * block_groups

    # Free row-major reshapes: lanes on the last dim, sublane groups next.
    x4 = x_main.reshape(num_slices, groups_per_slice, gran, LANES)
    y4 = y_main.reshape(num_slices, groups_per_slice, gran, LANES)

    kernel = _make_dice_kernel(block_groups, last_groups, steps, gran)

    partials = pl.pallas_call(
        kernel,
        out_shape=jax.ShapeDtypeStruct((num_slices, 3, gran, LANES), jnp.float32),
        grid=(num_slices, steps),
        in_specs=[
            pl.BlockSpec((1, block_groups, gran, LANES), lambda s, i: (s, i, 0, 0)),
            pl.BlockSpec((1, block_groups, gran, LANES), lambda s, i: (s, i, 0, 0)),
        ],
        out_specs=pl.BlockSpec((1, 3, gran, LANES), lambda s, i: (s, 0, 0, 0)),
        compiler_params=pltpu.CompilerParams(
            dimension_semantics=("parallel", "arbitrary"),
            vmem_limit_bytes=VMEM_LIMIT_BYTES,
        ),
    )(x4, y4)

    xy = jnp.sum(partials[:, 0])
    xx = jnp.sum(partials[:, 1])
    yy = jnp.sum(partials[:, 2])

    if n_main != n:
        # TODO(synk): the sub-tile tail (< num_slices*gran*128 elements) is
        # folded in with plain JAX; the prefix slice above may cost one copy.
        txy, txx, tyy = _partial_sums(inp[n_main:], target[n_main:])
        xy, xx, yy = xy + txy, xx + txx, yy + tyy

    return _combine(xy, xx, yy)


def dice_coeff_ref(inp, target):
    x = inp.astype(jnp.float32)
    y = target.astype(jnp.float32)
    inter = jnp.dot(x, y) + 0.0001
    union = jnp.sum(x * x) + jnp.sum(y * y) + 0.0001
    return 2.0 * inter / union


if __name__ == "__main__":
    # torch.dot requires 1-D inputs; use a flattened mask-like volume,
    # batch=2, channels=4, spatial=16x16  ->  N = 2048.
    N = 2 * 4 * 16 * 16
    key = jax.random.PRNGKey(0)
    k1, k2 = jax.random.split(key)
    inp = jax.nn.sigmoid(jax.random.normal(k1, (N,), dtype=jnp.float32))
    tgt = (jax.random.uniform(k2, (N,)) > 0.5).astype(jnp.float32)

    out = jax.block_until_ready(dice_coeff(inp, tgt))
    ref = jax.block_until_ready(dice_coeff_ref(inp, tgt))

    assert jnp.allclose(out, ref, rtol=1e-5, atol=1e-5), (out, ref)
    print("KERNEL_OK")
</pallas_src>

<mosaic_0001>
module attributes {stable_mosaic.version = 11 : i64} {
  func.func @kernel(%arg0: i32, %arg1: i32, %arg2: memref<1x1x8x128xf32, #tpu.memory_space<vmem>>, %arg3: memref<1x1x8x128xf32, #tpu.memory_space<vmem>>, %arg4: memref<1x3x8x128xf32, #tpu.memory_space<vmem>>) attributes {dimension_semantics = [#tpu.dimension_semantics<parallel>, #tpu.dimension_semantics<arbitrary>], iteration_bounds = array<i64: 2, 1>, scalar_prefetch = 0 : i64, scratch_operands = 0 : i64, tpu.core_type = #tpu.core_type<tc>, window_params = [{transform_indices = @transform_0, window_bounds = array<i64: 1, 1, 8, 128>}, {transform_indices = @transform_1, window_bounds = array<i64: 1, 1, 8, 128>}, {transform_indices = @transform_2, window_bounds = array<i64: 1, 3, 8, 128>}]} {
    %c0_i32 = arith.constant 0 : i32
    %0 = arith.cmpi eq, %arg1, %c0_i32 : i32
    %1 = arith.extui %0 : i1 to i32
    %c0_i32_0 = arith.constant 0 : i32
    %2 = arith.cmpi ne, %1, %c0_i32_0 : i32
    scf.if %2 {
      %cst_29 = arith.constant 0.000000e+00 : f32
      %34 = vector.broadcast %cst_29 : f32 to vector<1x3x8x128xf32>
      %c0_30 = arith.constant 0 : index
      %c0_31 = arith.constant 0 : index
      %c0_32 = arith.constant 0 : index
      %c0_33 = arith.constant 0 : index
      %35 = vector.load %arg4[%c0_30, %c0_31, %c0_32, %c0_33] : memref<1x3x8x128xf32, #tpu.memory_space<vmem>>, vector<1x3x8x128xf32>
      tpu.vector_store %arg4[%c0_30, %c0_31, %c0_32, %c0_33], %34 {strides = array<i32>} : memref<1x3x8x128xf32, #tpu.memory_space<vmem>>, vector<1x3x8x128xf32>,
    } else {
    }
    %cst = arith.constant 0.000000e+00 : f32
    %3 = vector.broadcast %cst : f32 to vector<8x128xf32>
    %c0_i32_1 = arith.constant 0 : i32
    %c0 = arith.constant 0 : index
    %4 = arith.index_cast %c0_i32_1 : i32 to index
    %c0_2 = arith.constant 0 : index
    %c0_3 = arith.constant 0 : index
    %5 = vector.load %arg2[%c0, %4, %c0_2, %c0_3] : memref<1x1x8x128xf32, #tpu.memory_space<vmem>>, vector<1x1x8x128xf32>
    %6 = vector.shape_cast %5 : vector<1x1x8x128xf32> to vector<8x128xf32>
    %c0_4 = arith.constant 0 : index
    %7 = arith.index_cast %c0_i32_1 : i32 to index
    %c0_5 = arith.constant 0 : index
    %c0_6 = arith.constant 0 : index
    %8 = vector.load %arg3[%c0_4, %7, %c0_5, %c0_6] : memref<1x1x8x128xf32, #tpu.memory_space<vmem>>, vector<1x1x8x128xf32>
    %9 = vector.shape_cast %8 : vector<1x1x8x128xf32> to vector<8x128xf32>
    %10 = arith.mulf %6, %9 : vector<8x128xf32>
    %11 = arith.addf %3, %10 : vector<8x128xf32>
    %12 = arith.mulf %6, %6 : vector<8x128xf32>
    %13 = arith.addf %3, %12 : vector<8x128xf32>
    %14 = arith.mulf %9, %9 : vector<8x128xf32>
    %15 = arith.addf %3, %14 : vector<8x128xf32>
    %c1_i32 = arith.constant 1 : i32
    %c0_7 = arith.constant 0 : index
    %c0_8 = arith.constant 0 : index
    %c0_9 = arith.constant 0 : index
    %c0_10 = arith.constant 0 : index
    %16 = vector.load %arg4[%c0_7, %c0_8, %c0_9, %c0_10] : memref<1x3x8x128xf32, #tpu.memory_space<vmem>>, vector<1x1x8x128xf32>
    %17 = vector.shape_cast %16 : vector<1x1x8x128xf32> to vector<8x128xf32>
    %18 = arith.addf %17, %11 : vector<8x128xf32>
    %c0_11 = arith.constant 0 : index
    %c0_12 = arith.constant 0 : index
    %c0_13 = arith.constant 0 : index
    %c0_14 = arith.constant 0 : index
    %19 = vector.load %arg4[%c0_11, %c0_12, %c0_13, %c0_14] : memref<1x3x8x128xf32, #tpu.memory_space<vmem>>, vector<1x1x8x128xf32>
    %20 = vector.shape_cast %19 : vector<1x1x8x128xf32> to vector<8x128xf32>
    %21 = vector.shape_cast %18 : vector<8x128xf32> to vector<1x1x8x128xf32>
    tpu.vector_store %arg4[%c0_11, %c0_12, %c0_13, %c0_14], %21 {strides = array<i32>} : memref<1x3x8x128xf32, #tpu.memory_space<vmem>>, vector<1x1x8x128xf32>,
    %c0_15 = arith.constant 0 : index
    %c1 = arith.constant 1 : index
    %c0_16 = arith.constant 0 : index
    %c0_17 = arith.constant 0 : index
    %22 = vector.load %arg4[%c0_15, %c1, %c0_16, %c0_17] : memref<1x3x8x128xf32, #tpu.memory_space<vmem>>, vector<1x1x8x128xf32>
    %23 = vector.shape_cast %22 : vector<1x1x8x128xf32> to vector<8x128xf32>
    %24 = arith.addf %23, %13 : vector<8x128xf32>
    %c0_18 = arith.constant 0 : index
    %c1_19 = arith.constant 1 : index
    %c0_20 = arith.constant 0 : index
    %c0_21 = arith.constant 0 : index
    %25 = vector.load %arg4[%c0_18, %c1_19, %c0_20, %c0_21] : memref<1x3x8x128xf32, #tpu.memory_space<vmem>>, vector<1x1x8x128xf32>
    %26 = vector.shape_cast %25 : vector<1x1x8x128xf32> to vector<8x128xf32>
    %27 = vector.shape_cast %24 : vector<8x128xf32> to vector<1x1x8x128xf32>
    tpu.vector_store %arg4[%c0_18, %c1_19, %c0_20, %c0_21], %27 {strides = array<i32>} : memref<1x3x8x128xf32, #tpu.memory_space<vmem>>, vector<1x1x8x128xf32>,
    %c0_22 = arith.constant 0 : index
    %c2 = arith.constant 2 : index
    %c0_23 = arith.constant 0 : index
    %c0_24 = arith.constant 0 : index
    %28 = vector.load %arg4[%c0_22, %c2, %c0_23, %c0_24] : memref<1x3x8x128xf32, #tpu.memory_space<vmem>>, vector<1x1x8x128xf32>
    %29 = vector.shape_cast %28 : vector<1x1x8x128xf32> to vector<8x128xf32>
    %30 = arith.addf %29, %15 : vector<8x128xf32>
    %c0_25 = arith.constant 0 : index
    %c2_26 = arith.constant 2 : index
    %c0_27 = arith.constant 0 : index
    %c0_28 = arith.constant 0 : index
    %31 = vector.load %arg4[%c0_25, %c2_26, %c0_27, %c0_28] : memref<1x3x8x128xf32, #tpu.memory_space<vmem>>, vector<1x1x8x128xf32>
    %32 = vector.shape_cast %31 : vector<1x1x8x128xf32> to vector<8x128xf32>
    %33 = vector.shape_cast %30 : vector<8x128xf32> to vector<1x1x8x128xf32>
    tpu.vector_store %arg4[%c0_25, %c2_26, %c0_27, %c0_28], %33 {strides = array<i32>} : memref<1x3x8x128xf32, #tpu.memory_space<vmem>>, vector<1x1x8x128xf32>,
    return
  }
  func.func @transform_0(%arg0: i32, %arg1: i32) -> (i32, i32, i32, i32) {
    %c0_i32 = arith.constant 0 : i32
    %c0_i32_0 = arith.constant 0 : i32
    %c0_i32_1 = arith.constant 0 : i32
    return %arg0, %arg1, %c0_i32, %c0_i32_0 : i32, i32, i32, i32
  }
  func.func @transform_1(%arg0: i32, %arg1: i32) -> (i32, i32, i32, i32) {
    %c0_i32 = arith.constant 0 : i32
    %c0_i32_0 = arith.constant 0 : i32
    %c0_i32_1 = arith.constant 0 : i32
    return %arg0, %arg1, %c0_i32, %c0_i32_0 : i32, i32, i32, i32
  }
  func.func @transform_2(%arg0: i32, %arg1: i32) -> (i32, i32, i32, i32) {
    %c0_i32 = arith.constant 0 : i32
    %c0_i32_0 = arith.constant 0 : i32
    %c0_i32_1 = arith.constant 0 : i32
    %c0_i32_2 = arith.constant 0 : i32
    return %arg0, %c0_i32, %c0_i32_0, %c0_i32_1 : i32, i32, i32, i32
  }
}

</mosaic_0001>

<llo_original>
// kernel: tpu_custom_call.1
$region0: #{tpu_custom_call.1}
  #allocation0 [shape = 'u32[]', space=smem, size = 0x4, offset = 0x4, fixed_abs, tag = 'smem constant byte address 0x4 - core index']
  #allocation1 [shape = 'u32[144,128]{1,0:T(1,128)}', space=vmem, size = 0x12000, scoped, tag = 'internal scratch']
  %s0 = inlined_call_operand.hbm [shape: f32[2,1,8,128], index: 0, kind: input, shape index: {}]
  %s1 = inlined_call_operand.hbm [shape: f32[2,1,8,128], index: 1, kind: input, shape index: {}]
  %s2 = inlined_call_operand.hbm [shape: f32[2,3,8,128], index: 2, kind: output, shape index: {}]
  %s3 = sld [smem:[#allocation0]]
  $region53: #{tpu_custom_call.1} parent=0
    _
  %s5 = ssub.s32 1, %s3
  %s6 = scalar_select 0, %s5, %s3
  $region1: #{tpu_custom_call.1} parent=0
    #allocation2 [shape = 'u8[8192]{0}', space=vmem, size = 0x2000, scoped, tag = 'input window, operand 0']
    #allocation3 [shape = 's32[2]{0}', space=sflag, size = 0x8, scoped, tag = 'scoped memory for tpu_custom_call.1']
    #allocation4 [shape = 's32[2]{0}', space=sflag, size = 0x8, scoped, tag = 'scoped memory for tpu_custom_call.1']
    #allocation5 [shape = 'u8[8192]{0}', space=vmem, size = 0x2000, scoped, tag = 'input window, operand 1']
    #allocation6 [shape = 's32[2]{0}', space=sflag, size = 0x8, scoped, tag = 'scoped memory for tpu_custom_call.1']
    #allocation7 [shape = 'u8[24576]{0}', space=vmem, size = 0x6000, scoped, tag = 'output window, operand 0']
    %7 = vsyncpa [#allocation3], 0
    %s8 = scalar_lea.sflag [#allocation3], 1
    %9 = vsyncpa %s8, 0
    %10 = vsyncpa [#allocation6], 0
    %s11 = scalar_lea.sflag [#allocation6], 1
    %12 = vsyncpa %s11, 0
    %13 = vsyncpa [#allocation4], 0
    %s14 = scalar_lea.sflag [#allocation4], 1
    %15 = vsyncpa %s14, 0
    loop: start=0, step=1, limit=4
    $region2: #{tpu_custom_call.1} parent=1 // loop_pre_header
      _
    $region3: #{tpu_custom_call.1} parent=1 // loop_header
      %s17 = sphi 0, %s21
      %p18 = scmp.ge.s32.totalorder %s17, 4
      %s24 = sphi 0, %s36
      %s25 = sphi 0, %s32
      %s26 = sphi 0, %s24
      %s27 = sphi 0, %s25
      %s28 = sphi 0, %s26
      %s29 = sphi 0, %s27
      %s41 = sphi 0, %s43
      %s44 = sphi 0, %s41
      %s45 = sphi 0, %s44
      %s61 = sphi 0, %s45
      %s69 = sphi 0, %s71
      %s72 = sphi 0, %s69
      %s73 = sphi 0, %s72
      %s89 = sphi 0, %s73
      %s95 = sphi 0, %s97
      %s98 = sphi 0, %s95
      %s99 = sphi 0, %s98
      %s115 = sphi 0, %s99
    $region4: #{tpu_custom_call.1} parent=1 // loop_header_branch
      %20 = sbr.rel (%p18) target = $region8
    $region5: #{tpu_custom_call.1} parent=1 // loop_body
      %s22 = ssub.s32 %s17, 1
      %s23 = ssub.s32 %s17, 2
      %s30 = sadd.s32 1, %s25
      %p31 = scmp.ge.s32.totalorder %s30, 1
      %s32 = scalar_select %p31, 0, %s30
      %s33 = sadd.s32 1, %s24
      %s34 = scalar_select %p31, %s33, %s24
      %p35 = scmp.ge.s32.totalorder %s34, 2
      %s36 = scalar_select %p35, 0, %s34
      %s37 = ssub.s32 %s24, %s36
      %s38 = ssub.s32 %s25, %s32
      %s39 = sor.u32 %s37, %s38
      %p40 = scmp.eq.s32.totalorder %s39, 0
      %s42 = sadd.s32 %s41, 1
      %s43 = scalar_select %p40, %s41, %s42
      %p46 = pneg %p40
      %p47 = scmp.eq.s32.totalorder %s17, 1
      %p48 = por %p46, %p47
      %p49 = scmp.ne.s32.totalorder %s41, %s44
      %p50 = scmp.eq.s32.totalorder %s17, 0
      %p51 = por %p49, %p50
      %p52 = scmp.ne.s32.totalorder %s41, %s44
      %p53 = scmp.eq.s32.totalorder %s22, 1
      %p54 = por %p52, %p53
      %p55 = scmp.ne.s32.totalorder %s44, %s45
      %p56 = scmp.eq.s32.totalorder %s22, 0
      %p57 = por %p55, %p56
      %p58 = scmp.ne.s32.totalorder %s44, %s45
      %p59 = scmp.eq.s32.totalorder %s23, 1
      %p60 = por %p58, %p59
      %p62 = scmp.ne.s32.totalorder %s45, %s61
      %p63 = scmp.eq.s32.totalorder %s23, 0
      %p64 = por %p62, %p63
      %s65 = ssub.s32 %s24, %s36
      %s66 = ssub.s32 %s25, %s32
      %s67 = sor.u32 %s65, %s66
      %p68 = scmp.eq.s32.totalorder %s67, 0
      %s70 = sadd.s32 %s69, 1
      %s71 = scalar_select %p68, %s69, %s70
      %p74 = pneg %p68
      %p75 = scmp.eq.s32.totalorder %s17, 1
      %p76 = por %p74, %p75
      %p77 = scmp.ne.s32.totalorder %s69, %s72
      %p78 = scmp.eq.s32.totalorder %s17, 0
      %p79 = por %p77, %p78
      %p80 = scmp.ne.s32.totalorder %s69, %s72
      %p81 = scmp.eq.s32.totalorder %s22, 1
      %p82 = por %p80, %p81
      %p83 = scmp.ne.s32.totalorder %s72, %s73
      %p84 = scmp.eq.s32.totalorder %s22, 0
      %p85 = por %p83, %p84
      %p86 = scmp.ne.s32.totalorder %s72, %s73
      %p87 = scmp.eq.s32.totalorder %s23, 1
      %p88 = por %p86, %p87
      %p90 = scmp.ne.s32.totalorder %s73, %s89
      %p91 = scmp.eq.s32.totalorder %s23, 0
      %p92 = por %p90, %p91
      %s93 = ssub.s32 %s24, %s36
      %p94 = scmp.eq.s32.totalorder %s93, 0
      %s96 = sadd.s32 %s95, 1
      %s97 = scalar_select %p94, %s95, %s96
      %p100 = pneg %p94
      %p101 = scmp.eq.s32.totalorder %s17, 1
      %p102 = por %p100, %p101
      %p103 = scmp.ne.s32.totalorder %s95, %s98
      %p104 = scmp.eq.s32.totalorder %s17, 0
      %p105 = por %p103, %p104
      %p106 = scmp.ne.s32.totalorder %s95, %s98
      %p107 = scmp.eq.s32.totalorder %s22, 1
      %p108 = por %p106, %p107
      %p109 = scmp.ne.s32.totalorder %s98, %s99
      %p110 = scmp.eq.s32.totalorder %s22, 0
      %p111 = por %p109, %p110
      %p112 = scmp.ne.s32.totalorder %s98, %s99
      %p113 = scmp.eq.s32.totalorder %s23, 1
      %p114 = por %p112, %p113
      %p116 = scmp.ne.s32.totalorder %s99, %s115
      %p117 = scmp.eq.s32.totalorder %s23, 0
      %p118 = por %p116, %p117
      %p119 = scmp.le.s32.totalorder 1, %s17
      %p120 = scmp.lt.s32.totalorder %s17, 3
      %p121 = pnand %p119, %p120
      %p122 = pneg %p121
      // Predicated region
      $region9: #{tpu_custom_call.1} parent=5 // pred_check
        _
      $region10: #{tpu_custom_call.1} parent=5 // pred_check_branch
        %124 = sbr.rel (%p121) target = $region12
      $region11: #{tpu_custom_call.1} parent=5 // pred_region
        %s125 = ssub.s32 %s17, 1
      $region12: #{tpu_custom_call.1} parent=5 // pred_fallthru
        _
      %p126 = scmp.lt.s32.totalorder %s17, 2
      // Predicated region
      $region13: #{tpu_custom_call.1} parent=5 // pred_check
        %p127 = pneg %p126
      $region14: #{tpu_custom_call.1} parent=5 // pred_check_branch
        %129 = sbr.rel (%p127) target = $region16
      $region15: #{tpu_custom_call.1} parent=5 // pred_region
        // Predicated region
        $region17: #{tpu_custom_call.1} parent=15 // pred_check
          %p130 = pneg %p51
        $region18: #{tpu_custom_call.1} parent=15 // pred_check_branch
          %132 = sbr.rel (%p130) target = $region20
        $region19: #{tpu_custom_call.1} parent=15 // pred_region
          %s133 = sand.u32 %s41, 1
          %s134 = scalar_lea.sflag [#allocation3], %s133
          %s135 = sand.u32 %s41, 1
          %s136 = smul.addr %s135, 8
          %s137 = scalar_lea.vmem [#allocation2], %s136
          %s139 = ssub.s32 128, 128
          %140 = vsyncadd %s134, %s139
          %s141 = sadd.s32 %s25, %s24
          %s142 = smul.addr %s141, 128
          %s143 = scalar_lea.hbm %s0, %s142
          %s145 = sshll.u32 %s137, 4
          %s146 = int_to_ptr.vmem [resolvable:$true] %s145
          %148 = dma.hbm_to_vmem [thread:$0]  %s143, 128, %s146, %s134
        $region20: #{tpu_custom_call.1} parent=15 // pred_fallthru
          _
        // Predicated region
        $region21: #{tpu_custom_call.1} parent=15 // pred_check
          %p149 = pneg %p79
        $region22: #{tpu_custom_call.1} parent=15 // pred_check_branch
          %151 = sbr.rel (%p149) target = $region24
        $region23: #{tpu_custom_call.1} parent=15 // pred_region
          %s152 = sand.u32 %s69, 1
          %s153 = scalar_lea.sflag [#allocation6], %s152
          %s154 = sand.u32 %s69, 1
          %s155 = smul.addr %s154, 8
          %s156 = scalar_lea.vmem [#allocation5], %s155
          %s158 = ssub.s32 128, 128
          %159 = vsyncadd %s153, %s158
          %s160 = sadd.s32 %s25, %s24
          %s161 = smul.addr %s160, 128
          %s162 = scalar_lea.hbm %s1, %s161
          %s164 = sshll.u32 %s156, 4
          %s165 = int_to_ptr.vmem [resolvable:$true] %s164
          %167 = dma.hbm_to_vmem [thread:$0]  %s162, 128, %s165, %s153
        $region24: #{tpu_custom_call.1} parent=15 // pred_fallthru
          _
      $region16: #{tpu_custom_call.1} parent=5 // pred_fallthru
        _
      %p168 = scmp.le.s32.totalorder 1, %s17
      %p169 = scmp.lt.s32.totalorder %s17, 3
      %p170 = pnand %p168, %p169
      %p171 = pneg %p170
      // Predicated region
      $region25: #{tpu_custom_call.1} parent=5 // pred_check
        _
      $region26: #{tpu_custom_call.1} parent=5 // pred_check_branch
        %173 = sbr.rel (%p170) target = $region28
      $region27: #{tpu_custom_call.1} parent=5 // pred_region
        %s174 = ssub.s32 %s17, 1
        %s175 = sand.u32 %s44, 1
        %s176 = scalar_lea.sflag [#allocation3], %s175
        %s177 = sand.u32 %s44, 1
        %s178 = smul.addr %s177, 8
        %s179 = scalar_lea.vmem [#allocation2], %s178
        // Predicated region
        $region29: #{tpu_custom_call.1} parent=27 // pred_check
          %p180 = pneg %p57
        $region30: #{tpu_custom_call.1} parent=27 // pred_check_branch
          %182 = sbr.rel (%p180) target = $region32
        $region31: #{tpu_custom_call.1} parent=27 // pred_region
          %183 = dma.done %s176, 128
        $region32: #{tpu_custom_call.1} parent=27 // pred_fallthru
          _
        %s184 = sand.u32 %s72, 1
        %s185 = scalar_lea.sflag [#allocation6], %s184
        %s186 = sand.u32 %s72, 1
        %s187 = smul.addr %s186, 8
        %s188 = scalar_lea.vmem [#allocation5], %s187
        // Predicated region
        $region33: #{tpu_custom_call.1} parent=27 // pred_check
          %p189 = pneg %p85
        $region34: #{tpu_custom_call.1} parent=27 // pred_check_branch
          %191 = sbr.rel (%p189) target = $region36
        $region35: #{tpu_custom_call.1} parent=27 // pred_region
          %192 = dma.done %s185, 128
        $region36: #{tpu_custom_call.1} parent=27 // pred_fallthru
          _
        %s193 = sand.u32 %s44, 1
        %s194 = scalar_lea.sflag [#allocation3], %s193
        %s195 = sand.u32 %s44, 1
        %s196 = smul.addr %s195, 8
        %s197 = scalar_lea.vmem [#allocation2], %s196
        %p198 = pneg %p57
        %p199 = pneg %p54
        %s200 = sand.u32 %s72, 1
        %s201 = scalar_lea.sflag [#allocation6], %s200
        %s202 = sand.u32 %s72, 1
        %s203 = smul.addr %s202, 8
        %s204 = scalar_lea.vmem [#allocation5], %s203
        %p205 = pneg %p85
        %p206 = pneg %p82
        %p207 = pneg %p111
        %p208 = pneg %p108
        %s209 = sand.u32 %s98, 1
        %s210 = scalar_lea.sflag [#allocation4], %s209
        %s211 = sand.u32 %s98, 1
        %s212 = smul.addr %s211, 24
        %s213 = scalar_lea.vmem [#allocation7], %s212
        %p214 = scmp.eq.s32.totalorder %s27, 0
        // Predicated region
        $region37: #{tpu_custom_call.1} parent=27 // pred_check
          %p215 = pneg %p214
        $region38: #{tpu_custom_call.1} parent=27 // pred_check_branch
          %217 = sbr.rel (%p215) target = $region40
        $region39: #{tpu_custom_call.1} parent=27 // pred_region
          %218 = vst [vmem:[%s213] sm:$0xff] 0.0
          %219 = vst [vmem:[%s213 + $0x8] sm:$0xff] 0.0
          %220 = vst [vmem:[%s213 + $0x10] sm:$0xff] 0.0
        $region40: #{tpu_custom_call.1} parent=27 // pred_fallthru
          _
        %v221 = vld [vmem:[%s179] sm:$0xff]
        %v222 = vld [vmem:[%s188] sm:$0xff]
        %v223 = vmul.f32 %v221, %v222
        %v224 = vadd.f32 %v223, 0.0
        %v225 = vmul.f32 %v221, %v221
        %v226 = vadd.f32 %v225, 0.0
        %v227 = vmul.f32 %v222, %v222
        %v228 = vadd.f32 %v227, 0.0
        %v229 = vld [vmem:[%s213] sm:$0xff]
        %v230 = vadd.f32 %v229, %v224
        %231 = vst [vmem:[%s213] sm:$0xff] %v230
        %s232 = scalar_lea.vmem %s213, 8 [#allocation7]
        %v233 = vld [vmem:[%s232] sm:$0xff]
        %v234 = vadd.f32 %v233, %v226
        %235 = vst [vmem:[%s232] sm:$0xff] %v234
        %s236 = scalar_lea.vmem %s213, 16 [#allocation7]
        %v237 = vld [vmem:[%s236] sm:$0xff]
        %v238 = vadd.f32 %v237, %v228
        %239 = vst [vmem:[%s236] sm:$0xff] %v238
        %s240 = sand.u32 %s98, 1
        %s241 = scalar_lea.sflag [#allocation4], %s240
        %s242 = sand.u32 %s98, 1
        %s243 = smul.addr %s242, 24
        %s244 = scalar_lea.vmem [#allocation7], %s243
        // Predicated region
        $region41: #{tpu_custom_call.1} parent=27 // pred_check
          %p245 = pneg %p108
        $region42: #{tpu_custom_call.1} parent=27 // pred_check_branch
          %247 = sbr.rel (%p245) target = $region44
        $region43: #{tpu_custom_call.1} parent=27 // pred_region
          %s249 = ssub.s32 384, 384
          %250 = vsyncadd %s241, %s249
          %s251 = smul.addr %s26, 3
          %s252 = smul.addr %s251, 128
          %s253 = scalar_lea.hbm %s2, %s252
          %s254 = sshll.u32 %s244, 4
          %s255 = int_to_ptr.vmem [resolvable:$true] %s254
          %260 = dma.vmem_to_hbm [thread:$0]  %s255, 384, %s253, %s241, 128, 128, 8
        $region44: #{tpu_custom_call.1} parent=27 // pred_fallthru
          _
      $region28: #{tpu_custom_call.1} parent=5 // pred_fallthru
        _
      %p261 = scmp.le.s32.totalorder 2, %s17
      // Predicated region
      $region45: #{tpu_custom_call.1} parent=5 // pred_check
        %p262 = pneg %p261
      $region46: #{tpu_custom_call.1} parent=5 // pred_check_branch
        %264 = sbr.rel (%p262) target = $region48
      $region47: #{tpu_custom_call.1} parent=5 // pred_region
        %s265 = ssub.s32 %s17, 2
        // Predicated region
        $region49: #{tpu_custom_call.1} parent=47 // pred_check
          %p266 = pneg %p114
        $region50: #{tpu_custom_call.1} parent=47 // pred_check_branch
          %268 = sbr.rel (%p266) target = $region52
        $region51: #{tpu_custom_call.1} parent=47 // pred_region
          %s269 = sand.u32 %s99, 1
          %s270 = scalar_lea.sflag [#allocation4], %s269
          %s271 = sand.u32 %s99, 1
          %s272 = smul.addr %s271, 24
          %s273 = scalar_lea.vmem [#allocation7], %s272
          %274 = dma.done %s270, 384
        $region52: #{tpu_custom_call.1} parent=47 // pred_fallthru
          _
      $region48: #{tpu_custom_call.1} parent=5 // pred_fallthru
        _
    $region6: #{tpu_custom_call.1} parent=1 // loop_footer
      %s21 = sadd.s32 1, %s17
    $region7: #{tpu_custom_call.1} parent=1 // loop_footer_branch
      %16 = sbr.rel target = $region3
    $region8: #{tpu_custom_call.1} parent=1 // loop_exit
      _
    %275 = vsyncpa [#allocation3], 1
    %s276 = scalar_lea.sflag [#allocation3], 1
    %277 = vsyncpa %s276, 1
    %278 = vsyncpa [#allocation6], 1
    %s279 = scalar_lea.sflag [#allocation6], 1
    %280 = vsyncpa %s279, 1
    %281 = vsyncpa [#allocation4], 1
    %s282 = scalar_lea.sflag [#allocation4], 1
    %283 = vsyncpa %s282, 1

</llo_original>
